<compile_context>
chip_gen: v5e
topology: v5e:2x2
jax: 0.10.0
libtpu: 0.0.40
codegen_flags: <defaults>
</compile_context>

<pallas_src>
import functools

import jax
import jax.numpy as jnp
import numpy as np
from jax.experimental import pallas as pl
from jax.experimental.pallas import tpu as pltpu

_LANES = 128
_TARGET_BLOCK_BYTES = 2 * 1024 * 1024  # ~2 MiB/block -> ~8 MiB of pipeline buffers


def _scale_kernel(x_ref, o_ref, *, scale):
    # Pure elementwise multiply on the VPU over the whole (block_rows, 128) tile.
    o_ref[...] = (x_ref[...] * scale).astype(o_ref.dtype)


def _round_up(x, m):
    return ((x + m - 1) // m) * m


def scale_forward(x, scale, *, target_block_bytes=_TARGET_BLOCK_BYTES):
    """Pallas implementation of Scale.forward: x * scale."""
    orig_shape = x.shape

    # `scale` is a Python constant in the PyTorch module -> bake it statically.
    # TODO(synk): if scale ever becomes a traced/learnable scalar, pass it as a
    # scalar SMEM input instead of a closure constant.
    scale = float(scale)

    # PyTorch promotes `int_tensor * python_float` to floating; mirror that.
    if jnp.issubdtype(x.dtype, jnp.floating):
        out_dtype = x.dtype
    else:
        out_dtype = jnp.float32

    n = int(np.prod(orig_shape)) if orig_shape else 1
    if n == 0:
        return (x * scale).astype(out_dtype)

    in_item = jnp.dtype(x.dtype).itemsize
    out_item = jnp.dtype(out_dtype).itemsize
    # Sublane granularity: 8 rows for 4-byte, 16 for 2-byte, 32 for 1-byte.
    sub = max(8, 32 // min(in_item, out_item, 4))
    bytes_per_row = _LANES * max(in_item, out_item)
    target_rows = max(sub, (target_block_bytes // bytes_per_row) // sub * sub)

    # Flatten to a lane-dense (rows, 128) slab. Only pad the <128-element lane
    # remainder when numel is not a multiple of 128 (avoids extra HBM passes).
    flat = x.reshape(-1)
    rows_p = pl.cdiv(n, _LANES)
    padded = (rows_p * _LANES != n)
    if padded:
        flat = jnp.pad(flat, (0, rows_p * _LANES - n))
    x2 = flat.reshape(rows_p, _LANES)

    # Choose the row tile.
    if rows_p <= target_rows:
        # Single grid step; block == full array dims (always a legal block shape).
        block_rows = rows_p
    else:
        block_rows = target_rows
        if pl.cdiv(rows_p, block_rows) < 4:
            # Give the DMA pipeline (and v7x's two TensorCores) a few steps each.
            block_rows = max(sub, _round_up(pl.cdiv(rows_p, 4), sub))
        block_rows = min(block_rows, rows_p)
    grid = (pl.cdiv(rows_p, block_rows),)

    out2 = pl.pallas_call(
        functools.partial(_scale_kernel, scale=scale),
        out_shape=jax.ShapeDtypeStruct((rows_p, _LANES), out_dtype),
        grid=grid,
        in_specs=[pl.BlockSpec((block_rows, _LANES), lambda i: (i, 0))],
        out_specs=pl.BlockSpec((block_rows, _LANES), lambda i: (i, 0)),
        compiler_params=pltpu.CompilerParams(
            dimension_semantics=("parallel",)),
    )(x2)

    if padded:
        return out2.reshape(-1)[:n].reshape(orig_shape)
    return out2.reshape(orig_shape)


def scale_reference(x, scale):
    """Pure-JAX reference mirroring the PyTorch forward."""
    if jnp.issubdtype(x.dtype, jnp.floating):
        return x * scale
    return x.astype(jnp.float32) * scale


if __name__ == "__main__":
    key = jax.random.PRNGKey(0)
    scale = 0.125  # e.g. dim_head ** -0.5 for dim_head = 64

    # Primary case: small shape consistent with how Scale is used inside
    # deformable attention (scaling queries).
    batch, channels, height, width = 2, 4, 16, 16
    x = jax.random.normal(key, (batch, channels, height, width), jnp.float32)
    out = jax.block_until_ready(scale_forward(x, scale))
    ref = scale_reference(x, scale)
    np.testing.assert_allclose(np.asarray(out), np.asarray(ref),
                               rtol=1e-6, atol=1e-6)
    assert out.shape == x.shape and out.dtype == x.dtype

    # bf16 path (dtype-aware tiling) — lane-aligned, no pad/un-slab.
    xb = jax.random.normal(key, (2, 4, 16, 16), jnp.bfloat16)
    outb = jax.block_until_ready(scale_forward(xb, scale))
    np.testing.assert_allclose(np.asarray(outb, np.float32),
                               np.asarray(scale_reference(xb, scale), np.float32),
                               rtol=1e-2, atol=1e-2)
    assert outb.dtype == xb.dtype and outb.shape == xb.shape

    # Misaligned (numel % 128 != 0) path.
    xm = jax.random.normal(key, (3, 5, 7), jnp.float32)
    outm = jax.block_until_ready(scale_forward(xm, scale))
    np.testing.assert_allclose(np.asarray(outm), np.asarray(scale_reference(xm, scale)),
                               rtol=1e-6, atol=1e-6)
    assert outm.shape == xm.shape

    print("KERNEL_OK")
</pallas_src>

<mosaic_0001>
module attributes {stable_mosaic.version = 11 : i64} {
  func.func @_scale_kernel(%arg0: i32, %arg1: memref<16x128xf32, #tpu.memory_space<vmem>>, %arg2: memref<16x128xf32, #tpu.memory_space<vmem>>) attributes {dimension_semantics = [#tpu.dimension_semantics<parallel>], iteration_bounds = array<i64: 1>, scalar_prefetch = 0 : i64, scratch_operands = 0 : i64, tpu.core_type = #tpu.core_type<tc>, window_params = [{transform_indices = @transform_0, window_bounds = array<i64: 16, 128>}, {transform_indices = @transform_1, window_bounds = array<i64: 16, 128>}]} {
    %c0 = arith.constant 0 : index
    %c0_0 = arith.constant 0 : index
    %0 = vector.load %arg1[%c0, %c0_0] : memref<16x128xf32, #tpu.memory_space<vmem>>, vector<16x128xf32>
    %cst = arith.constant 1.250000e-01 : f32
    %1 = vector.broadcast %cst : f32 to vector<16x128xf32>
    %2 = arith.mulf %0, %1 : vector<16x128xf32>
    %c0_1 = arith.constant 0 : index
    %c0_2 = arith.constant 0 : index
    %3 = vector.load %arg2[%c0_1, %c0_2] : memref<16x128xf32, #tpu.memory_space<vmem>>, vector<16x128xf32>
    tpu.vector_store %arg2[%c0_1, %c0_2], %2 {strides = array<i32>} : memref<16x128xf32, #tpu.memory_space<vmem>>, vector<16x128xf32>,
    return
  }
  func.func @transform_0(%arg0: i32) -> (i32, i32) {
    %c0_i32 = arith.constant 0 : i32
    %c0_i32_0 = arith.constant 0 : i32
    return %arg0, %c0_i32 : i32, i32
  }
  func.func @transform_1(%arg0: i32) -> (i32, i32) {
    %c0_i32 = arith.constant 0 : i32
    %c0_i32_0 = arith.constant 0 : i32
    return %arg0, %c0_i32 : i32, i32
  }
}

</mosaic_0001>

<llo_original>
// kernel: tpu_custom_call.1
$region0: #{tpu_custom_call.1}
  #allocation0 [shape = 'u32[]', space=smem, size = 0x4, offset = 0x4, fixed_abs, tag = 'smem constant byte address 0x4 - core index']
  #allocation1 [shape = 'u32[72,128]{1,0:T(1,128)}', space=vmem, size = 0x9000, scoped, tag = 'internal scratch']
  %s0 = inlined_call_operand.hbm [shape: f32[16,128], index: 0, kind: input, shape index: {}]
  %s1 = inlined_call_operand.hbm [shape: f32[16,128], index: 1, kind: output, shape index: {}]
  %s2 = sld [smem:[#allocation0]]
  $region18: #{tpu_custom_call.1} parent=0
    _
  %s4 = ssub.s32 1, %s2
  %s5 = scalar_select 0, %s4, %s2
  $region1: #{tpu_custom_call.1} parent=0
    #allocation2 [shape = 'u8[8192]{0}', space=vmem, size = 0x2000, scoped, tag = 'input window, operand 0, single buffered']
    #allocation3 [shape = 's32[1]{0}', space=sflag, size = 0x4, scoped, tag = 'scoped memory for tpu_custom_call.1']
    #allocation4 [shape = 's32[1]{0}', space=sflag, size = 0x4, scoped, tag = 'scoped memory for tpu_custom_call.1']
    #allocation5 [shape = 'u8[8192]{0}', space=vmem, size = 0x2000, scoped, tag = 'output window, operand 0, single buffered']
    %6 = vsyncpa [#allocation3], 0
    %7 = vsyncpa [#allocation4], 0
    // Predicated region
    $region2: #{tpu_custom_call.1} parent=1 // pred_check
      _
    $region3: #{tpu_custom_call.1} parent=1 // pred_check_branch
      %9 = sbr.rel (0) target = $region5
    $region4: #{tpu_custom_call.1} parent=1 // pred_region
      %11 = vsyncadd [#allocation3], 0
      %s12 = sshll.u32 %s0, 4
      %s13 = int_to_ptr.hbm [resolvable:$true] %s12
      %s14 = sshll.u32 [#allocation2], 4
      %s15 = int_to_ptr.vmem [resolvable:$true] %s14
      %20 = dma.hbm_to_vmem [thread:$0]  %s13, 256, %s15, [#allocation3], 128, 128, 8
    $region5: #{tpu_custom_call.1} parent=1 // pred_fallthru
      _
    // Predicated region
    $region6: #{tpu_custom_call.1} parent=1 // pred_check
      _
    $region7: #{tpu_custom_call.1} parent=1 // pred_check_branch
      %22 = sbr.rel (0) target = $region9
    $region8: #{tpu_custom_call.1} parent=1 // pred_region
      %24 = dma.done [#allocation3], 256
    $region9: #{tpu_custom_call.1} parent=1 // pred_fallthru
      _
    %v25 = vld [vmem:[#allocation2] sm:$0xff]
    %v26 = vld [vmem:[#allocation2 + $0x8] sm:$0xff]
    %v27 = vmul.f32 %v25, 0.125
    %v28 = vmul.f32 %v26, 0.125
    %29 = vst [vmem:[#allocation5] sm:$0xff] %v27
    %30 = vst [vmem:[#allocation5 + $0x8] sm:$0xff] %v28
    // Predicated region
    $region10: #{tpu_custom_call.1} parent=1 // pred_check
      _
    $region11: #{tpu_custom_call.1} parent=1 // pred_check_branch
      %32 = sbr.rel (0) target = $region13
    $region12: #{tpu_custom_call.1} parent=1 // pred_region
      %34 = vsyncadd [#allocation4], 0
      %s35 = sshll.u32 [#allocation5], 4
      %s36 = int_to_ptr.vmem [resolvable:$true] %s35
      %s37 = sshll.u32 %s1, 4
      %s38 = int_to_ptr.hbm [resolvable:$true] %s37
      %43 = dma.vmem_to_hbm [thread:$0]  %s36, 256, %s38, [#allocation4], 128, 128, 8
    $region13: #{tpu_custom_call.1} parent=1 // pred_fallthru
      _
    // Predicated region
    $region14: #{tpu_custom_call.1} parent=1 // pred_check
      _
    $region15: #{tpu_custom_call.1} parent=1 // pred_check_branch
      %45 = sbr.rel (0) target = $region17
    $region16: #{tpu_custom_call.1} parent=1 // pred_region
      %47 = dma.done [#allocation4], 256
    $region17: #{tpu_custom_call.1} parent=1 // pred_fallthru
      _
    %48 = vsyncpa [#allocation3], 1
    %49 = vsyncpa [#allocation4], 1

</llo_original>
